<compile_context>
chip_gen: v7x
topology: tpu7x:2x2x1
jax: 0.10.0
libtpu: 0.0.40
codegen_flags: <defaults>
</compile_context>

<pallas_src>
import functools

import jax
import jax.numpy as jnp
from jax import lax
from jax.experimental import pallas as pl
from jax.experimental.pallas import tpu as pltpu


def _round_up(x, m):
    return (x + m - 1) // m * m


def classifier_kernel(x_ref, w_ref, b_ref, o_ref):
    # x_ref: (tb, C, HW) f32   activation tile (constant block index across class axis)
    # w_ref: (C, tn)     bf16  fc weight tile, pre-transposed (canonical MXU RHS layout)
    # b_ref: (1, tn)     f32   bias tile
    # o_ref: (tb, tn)    f32   logits tile
    # AdaptiveAvgPool2d(1) + view: spatial mean over the lane axis (XLU), f32 accumulation.
    pooled = jnp.mean(x_ref[...], axis=-1)                      # (tb, C) f32
    # Linear: bf16 x bf16 on the MXU with f32 accumulation, no in-kernel transpose.
    out = lax.dot_general(
        pooled.astype(jnp.bfloat16), w_ref[...],
        dimension_numbers=(((1,), (0,)), ((), ())),
        preferred_element_type=jnp.float32)
    o_ref[...] = out + b_ref[...]


def prepare_classifier_params(weight, bias):
    """One-time parameter prep (call OUTSIDE the hot path / jitted forward).

    weight: (num_classes, feat_in) f32  -> (feat_in, num_classes_padded) bf16
    bias:   (num_classes,)         f32  -> (1, num_classes_padded)       f32
    """
    num_classes, feat_in = weight.shape
    n_pad = _round_up(num_classes, 128)
    w_t = jnp.zeros((feat_in, n_pad), dtype=jnp.bfloat16)
    w_t = w_t.at[:, :num_classes].set(weight.T.astype(jnp.bfloat16))
    b_pad = jnp.zeros((1, n_pad), dtype=jnp.float32)
    b_pad = b_pad.at[:, :num_classes].set(bias.astype(jnp.float32)[None, :])
    return w_t, b_pad, num_classes


@functools.partial(jax.jit, static_argnames=("num_classes", "tb", "tn"))
def classifier_forward(x_nchw, w_t, b_pad, num_classes, *, tb=None, tn=None):
    """x_nchw: (B, C, H, W) f32; w_t: (C, Np) bf16 (pre-transposed, padded); b_pad: (1, Np) f32."""
    B, C, H, W = x_nchw.shape
    feat_in, n_pad = w_t.shape
    assert feat_in == C
    HW = H * W

    # Trivial contiguous collapse (no transpose, no extra HBM traffic).
    x3 = x_nchw.reshape(B, C, HW).astype(jnp.float32)

    # Batch tile: cap at 32 so the double-buffered (tb, C, HW) block stays well under
    # the 32 MiB default scoped VMEM even for the real head (C=1024, 7x7) — v7x safe.
    if tb is None:
        tb = B if B <= 32 else 32
    n_batch_tiles = pl.cdiv(B, tb)

    # Class tile: if the grid already has >=2 points (large batch) collapse the class
    # axis (one wide tile, fewest grid steps — best for single-TC v5e/v6e); otherwise
    # use 2 class tiles so a 2-TC chip (v7x) can shard the work.  Override via tn=.
    if tn is None:
        if n_batch_tiles >= 2 or n_pad < 256 or (n_pad % 256) != 0:
            tn = n_pad
        else:
            tn = n_pad // 2
    grid = (n_batch_tiles, pl.cdiv(n_pad, tn))

    cost = pl.CostEstimate(
        flops=2 * B * C * n_pad + B * C * HW,
        transcendentals=0,
        bytes_accessed=(B * C * HW * 4        # activations (streamed once)
                        + C * n_pad * 2       # bf16 weight
                        + n_pad * 4           # bias
                        + B * n_pad * 4))     # logits

    logits_padded = pl.pallas_call(
        classifier_kernel,
        out_shape=jax.ShapeDtypeStruct((B, n_pad), jnp.float32),
        grid_spec=pltpu.PrefetchScalarGridSpec(
            num_scalar_prefetch=0,
            grid=grid,
            in_specs=[
                pl.BlockSpec((tb, C, HW), lambda i, j: (i, 0, 0)),  # constant across j -> no re-fetch
                pl.BlockSpec((C, tn), lambda i, j: (0, j)),         # weight tile (K on sublanes, N on lanes)
                pl.BlockSpec((1, tn), lambda i, j: (0, j)),         # bias tile
            ],
            out_specs=pl.BlockSpec((tb, tn), lambda i, j: (i, j)),
        ),
        compiler_params=pltpu.CompilerParams(
            dimension_semantics=("parallel", "parallel")),
        cost_estimate=cost,
    )(x3, w_t, b_pad)

    # Drop zero-padded classes (padded weight cols and bias are zero).
    return logits_padded[:, :num_classes]


if __name__ == "__main__":
    # Small shapes consistent with the module: feat_in = C, 7x7 spatial (like the real
    # ReActNet head), and the real 1000-class count to exercise the pad-to-128 path.
    B, C, H, W = 4, 32, 7, 7
    num_classes = 1000

    key = jax.random.PRNGKey(0)
    kx, kw, kb = jax.random.split(key, 3)

    x = jax.random.normal(kx, (B, C, H, W), dtype=jnp.float32)

    # nn.Linear params: kaiming_normal_ weight (fan_in = feat_in), default uniform bias.
    fan_in = C
    weight = jax.random.normal(kw, (num_classes, C), dtype=jnp.float32) * jnp.sqrt(2.0 / fan_in)
    bound = 1.0 / jnp.sqrt(float(fan_in))
    bias = jax.random.uniform(kb, (num_classes,), dtype=jnp.float32,
                              minval=-bound, maxval=bound)

    # One-time param prep (hoisted out of the jitted forward).
    w_t, b_pad, nc = prepare_classifier_params(weight, bias)

    out = classifier_forward(x, w_t, b_pad, nc)
    out = jax.block_until_ready(out)

    # Pure-JAX reference with the same bf16 rounding the kernel applies (weight and
    # pooled activations), accurate f32 accumulation.
    pooled_ref = jnp.mean(x, axis=(2, 3))                                 # pool + view
    w_rounded = weight.astype(jnp.bfloat16).astype(jnp.float32)
    p_rounded = pooled_ref.astype(jnp.bfloat16).astype(jnp.float32)
    ref = jnp.dot(p_rounded, w_rounded.T,
                  precision=lax.Precision.HIGHEST) + bias                 # Linear

    assert out.shape == (B, num_classes)
    assert bool(jnp.allclose(out, ref, atol=1e-2, rtol=1e-2)), "mismatch vs reference"

    print("KERNEL_OK")
</pallas_src>

<mosaic_0001>
module attributes {stable_mosaic.version = 11 : i64} {
  func.func @classifier_kernel(%arg0: i32, %arg1: i32, %arg2: memref<4x32x49xf32, #tpu.memory_space<vmem>>, %arg3: memref<32x512xbf16, #tpu.memory_space<vmem>>, %arg4: memref<1x512xf32, #tpu.memory_space<vmem>>, %arg5: memref<4x512xf32, #tpu.memory_space<vmem>>) attributes {dimension_semantics = [#tpu.dimension_semantics<parallel>, #tpu.dimension_semantics<parallel>], iteration_bounds = array<i64: 1, 2>, scalar_prefetch = 0 : i64, scratch_operands = 0 : i64, tpu.core_type = #tpu.core_type<tc>, window_params = [{transform_indices = @transform_0, window_bounds = array<i64: 4, 32, 49>}, {transform_indices = @transform_1, window_bounds = array<i64: 32, 512>}, {transform_indices = @transform_2, window_bounds = array<i64: 1, 512>}, {transform_indices = @transform_3, window_bounds = array<i64: 4, 512>}]} {
    %c0 = arith.constant 0 : index
    %c0_0 = arith.constant 0 : index
    %c0_1 = arith.constant 0 : index
    %0 = vector.load %arg2[%c0, %c0_0, %c0_1] : memref<4x32x49xf32, #tpu.memory_space<vmem>>, vector<4x32x49xf32>
    %cst = arith.constant dense<0.000000e+00> : vector<4x32xf32>
    %1 = vector.multi_reduction <add>, %0, %cst [2] : vector<4x32x49xf32> to vector<4x32xf32>
    %cst_2 = arith.constant 4.900000e+01 : f32
    %2 = vector.broadcast %cst_2 : f32 to vector<4x32xf32>
    %3 = arith.divf %1, %2 : vector<4x32xf32>
    %4 = arith.truncf %3 : vector<4x32xf32> to vector<4x32xbf16>
    %c0_3 = arith.constant 0 : index
    %c0_4 = arith.constant 0 : index
    %5 = vector.load %arg3[%c0_3, %c0_4] : memref<32x512xbf16, #tpu.memory_space<vmem>>, vector<32x512xbf16>
    %cst_5 = arith.constant dense<0.000000e+00> : vector<4x512xf32>
    %6 = tpu.matmul %4, %5, %cst_5 {dimension_numbers = #tpu.dot_dimension_numbers<[1], [0], [0], [1], [0, 0, 1, 1], [], []>} : vector<4x32xbf16>, vector<32x512xbf16>, vector<4x512xf32> -> vector<4x512xf32>
    %c0_6 = arith.constant 0 : index
    %c0_7 = arith.constant 0 : index
    %7 = vector.load %arg4[%c0_6, %c0_7] : memref<1x512xf32, #tpu.memory_space<vmem>>, vector<1x512xf32>
    %8 = vector.broadcast %7 : vector<1x512xf32> to vector<4x512xf32>
    %9 = arith.addf %6, %8 : vector<4x512xf32>
    %c0_8 = arith.constant 0 : index
    %c0_9 = arith.constant 0 : index
    %10 = vector.load %arg5[%c0_8, %c0_9] : memref<4x512xf32, #tpu.memory_space<vmem>>, vector<4x512xf32>
    tpu.vector_store %arg5[%c0_8, %c0_9], %9 {strides = array<i32>} : memref<4x512xf32, #tpu.memory_space<vmem>>, vector<4x512xf32>,
    return
  }
  func.func @transform_0(%arg0: i32, %arg1: i32) -> (i32, i32, i32) {
    %c0_i32 = arith.constant 0 : i32
    %c0_i32_0 = arith.constant 0 : i32
    %c0_i32_1 = arith.constant 0 : i32
    return %arg0, %c0_i32, %c0_i32_0 : i32, i32, i32
  }
  func.func @transform_1(%arg0: i32, %arg1: i32) -> (i32, i32) {
    %c0_i32 = arith.constant 0 : i32
    %c0_i32_0 = arith.constant 0 : i32
    return %c0_i32, %arg1 : i32, i32
  }
  func.func @transform_2(%arg0: i32, %arg1: i32) -> (i32, i32) {
    %c0_i32 = arith.constant 0 : i32
    %c0_i32_0 = arith.constant 0 : i32
    return %c0_i32, %arg1 : i32, i32
  }
  func.func @transform_3(%arg0: i32, %arg1: i32) -> (i32, i32) {
    %c0_i32 = arith.constant 0 : i32
    return %arg0, %arg1 : i32, i32
  }
}

</mosaic_0001>

<llo_original>
// kernel: classifier_forward.1
$region0: #{classifier_forward.1}
  #allocation0 [shape = 'u32[]', space=smem, size = 0x4, offset = 0x4, fixed_abs, tag = 'smem constant byte address 0x4 - core index']
  #allocation1 [shape = 'u32[144,128]{1,0:T(1,128)}', space=vmem, size = 0x12000, scoped, tag = 'internal scratch']
  %s0 = inlined_call_operand.vmem [shape: f32[4,32,49], index: 0, kind: input, shape index: {}]
  %s1 = inlined_call_operand.vmem [shape: bf16[32,1024], index: 1, kind: input, shape index: {}]
  %s2 = inlined_call_operand.vmem [shape: f32[1,1024], index: 2, kind: input, shape index: {}]
  %s3 = inlined_call_operand.hbm [shape: f32[4,1024], index: 3, kind: output, shape index: {}]
  %s4 = sld [smem:[#allocation0]]
  $region68: #{classifier_forward.1} parent=0
    _
  %s6 = ssub.s32 1, %s4
  %s7 = scalar_select 0, %s6, %s4
  $region1: #{classifier_forward.1} parent=0
    #allocation2 [shape = 'u8[65536]{0}', space=vmem, size = 0x10000, scoped, tag = 'input window, operand 1']
    #allocation3 [shape = 'u8[16384]{0}', space=vmem, size = 0x4000, scoped, tag = 'output window, operand 0']
    #allocation4 [shape = 's32[2]{0}', space=sflag, size = 0x8, scoped, tag = 'scoped memory for classifier_forward.1']
    %8 = vsyncpa [#allocation4], 0
    %s9 = scalar_lea.sflag [#allocation4], 1
    %10 = vsyncpa %s9, 0
    loop: start=0, step=1, limit=4
    $region2: #{classifier_forward.1} parent=1 // loop_pre_header
      _
    $region3: #{classifier_forward.1} parent=1 // loop_header
      %s12 = sphi 0, %s16
      %p13 = scmp.ge.s32.totalorder %s12, 4
      %s19 = sphi 0, %s31
      %s20 = sphi 0, %s27
      %s21 = sphi 0, %s19
      %s22 = sphi 0, %s20
      %s23 = sphi 0, %s21
      %s24 = sphi 0, %s22
      %s34 = sphi 0, %s36
      %s37 = sphi 0, %s34
      %s38 = sphi 0, %s37
      %s54 = sphi 0, %s38
      %s60 = sphi 0, %s62
      %s63 = sphi 0, %s60
      %s64 = sphi 0, %s63
      %s80 = sphi 0, %s64
      %s86 = sphi 0, %s88
      %s89 = sphi 0, %s86
      %s90 = sphi 0, %s89
      %s106 = sphi 0, %s90
      %s114 = sphi 0, %s116
      %s117 = sphi 0, %s114
      %s118 = sphi 0, %s117
      %s134 = sphi 0, %s118
    $region4: #{classifier_forward.1} parent=1 // loop_header_branch
      %15 = sbr.rel (%p13) target = $region8
    $region5: #{classifier_forward.1} parent=1 // loop_body
      %s17 = ssub.s32 %s12, 1
      %s18 = ssub.s32 %s12, 2
      %s25 = sadd.s32 1, %s20
      %p26 = scmp.ge.s32.totalorder %s25, 2
      %s27 = scalar_select %p26, 0, %s25
      %s28 = sadd.s32 1, %s19
      %s29 = scalar_select %p26, %s28, %s19
      %p30 = scmp.ge.s32.totalorder %s29, 1
      %s31 = scalar_select %p30, 0, %s29
      %s32 = ssub.s32 %s19, %s31
      %p33 = scmp.eq.s32.totalorder %s32, 0
      %s35 = sadd.s32 %s34, 1
      %s36 = scalar_select %p33, %s34, %s35
      %p39 = pneg %p33
      %p40 = scmp.eq.s32.totalorder %s12, 1
      %p41 = por %p39, %p40
      %p42 = scmp.ne.s32.totalorder %s34, %s37
      %p43 = scmp.eq.s32.totalorder %s12, 0
      %p44 = por %p42, %p43
      %p45 = scmp.ne.s32.totalorder %s34, %s37
      %p46 = scmp.eq.s32.totalorder %s17, 1
      %p47 = por %p45, %p46
      %p48 = scmp.ne.s32.totalorder %s37, %s38
      %p49 = scmp.eq.s32.totalorder %s17, 0
      %p50 = por %p48, %p49
      %p51 = scmp.ne.s32.totalorder %s37, %s38
      %p52 = scmp.eq.s32.totalorder %s18, 1
      %p53 = por %p51, %p52
      %p55 = scmp.ne.s32.totalorder %s38, %s54
      %p56 = scmp.eq.s32.totalorder %s18, 0
      %p57 = por %p55, %p56
      %s58 = ssub.s32 %s20, %s27
      %p59 = scmp.eq.s32.totalorder %s58, 0
      %s61 = sadd.s32 %s60, 1
      %s62 = scalar_select %p59, %s60, %s61
      %p65 = pneg %p59
      %p66 = scmp.eq.s32.totalorder %s12, 1
      %p67 = por %p65, %p66
      %p68 = scmp.ne.s32.totalorder %s60, %s63
      %p69 = scmp.eq.s32.totalorder %s12, 0
      %p70 = por %p68, %p69
      %p71 = scmp.ne.s32.totalorder %s60, %s63
      %p72 = scmp.eq.s32.totalorder %s17, 1
      %p73 = por %p71, %p72
      %p74 = scmp.ne.s32.totalorder %s63, %s64
      %p75 = scmp.eq.s32.totalorder %s17, 0
      %p76 = por %p74, %p75
      %p77 = scmp.ne.s32.totalorder %s63, %s64
      %p78 = scmp.eq.s32.totalorder %s18, 1
      %p79 = por %p77, %p78
      %p81 = scmp.ne.s32.totalorder %s64, %s80
      %p82 = scmp.eq.s32.totalorder %s18, 0
      %p83 = por %p81, %p82
      %s84 = ssub.s32 %s20, %s27
      %p85 = scmp.eq.s32.totalorder %s84, 0
      %s87 = sadd.s32 %s86, 1
      %s88 = scalar_select %p85, %s86, %s87
      %p91 = pneg %p85
      %p92 = scmp.eq.s32.totalorder %s12, 1
      %p93 = por %p91, %p92
      %p94 = scmp.ne.s32.totalorder %s86, %s89
      %p95 = scmp.eq.s32.totalorder %s12, 0
      %p96 = por %p94, %p95
      %p97 = scmp.ne.s32.totalorder %s86, %s89
      %p98 = scmp.eq.s32.totalorder %s17, 1
      %p99 = por %p97, %p98
      %p100 = scmp.ne.s32.totalorder %s89, %s90
      %p101 = scmp.eq.s32.totalorder %s17, 0
      %p102 = por %p100, %p101
      %p103 = scmp.ne.s32.totalorder %s89, %s90
      %p104 = scmp.eq.s32.totalorder %s18, 1
      %p105 = por %p103, %p104
      %p107 = scmp.ne.s32.totalorder %s90, %s106
      %p108 = scmp.eq.s32.totalorder %s18, 0
      %p109 = por %p107, %p108
      %s110 = ssub.s32 %s19, %s31
      %s111 = ssub.s32 %s20, %s27
      %s112 = sor.u32 %s110, %s111
      %p113 = scmp.eq.s32.totalorder %s112, 0
      %s115 = sadd.s32 %s114, 1
      %s116 = scalar_select %p113, %s114, %s115
      %p119 = pneg %p113
      %p120 = scmp.eq.s32.totalorder %s12, 1
      %p121 = por %p119, %p120
      %p122 = scmp.ne.s32.totalorder %s114, %s117
      %p123 = scmp.eq.s32.totalorder %s12, 0
      %p124 = por %p122, %p123
      %p125 = scmp.ne.s32.totalorder %s114, %s117
      %p126 = scmp.eq.s32.totalorder %s17, 1
      %p127 = por %p125, %p126
      %p128 = scmp.ne.s32.totalorder %s117, %s118
      %p129 = scmp.eq.s32.totalorder %s17, 0
      %p130 = por %p128, %p129
      %p131 = scmp.ne.s32.totalorder %s117, %s118
      %p132 = scmp.eq.s32.totalorder %s18, 1
      %p133 = por %p131, %p132
      %p135 = scmp.ne.s32.totalorder %s118, %s134
      %p136 = scmp.eq.s32.totalorder %s18, 0
      %p137 = por %p135, %p136
      %p138 = scmp.le.s32.totalorder 1, %s12
      %p139 = scmp.lt.s32.totalorder %s12, 3
      %p140 = pnand %p138, %p139
      %p141 = pneg %p140
      // Predicated region
      $region9: #{classifier_forward.1} parent=5 // pred_check
        _
      $region10: #{classifier_forward.1} parent=5 // pred_check_branch
        %143 = sbr.rel (%p140) target = $region12
      $region11: #{classifier_forward.1} parent=5 // pred_region
        %s144 = ssub.s32 %s12, 1
        // Predicated region
        $region13: #{classifier_forward.1} parent=11 // pred_check
          %p145 = pneg %p50
        $region14: #{classifier_forward.1} parent=11 // pred_check_branch
          %147 = sbr.rel (%p145) target = $region16
        $region15: #{classifier_forward.1} parent=11 // pred_region
          %s148 = smul.u32 4, %s21
          %p149 = scmp.lt.s32.totalorder %s148, 3
          %s150 = scalar_select %p149, %s148, 3
          %s151 = smul.addr %s150, 4
          %s152 = smul.addr %s151, 8
          %s153 = scalar_lea.vmem %s0, %s152
          %s154 = smul.u32 4, %s21
        $region16: #{classifier_forward.1} parent=11 // pred_fallthru
          _
      $region12: #{classifier_forward.1} parent=5 // pred_fallthru
        _
      %p155 = scmp.lt.s32.totalorder %s12, 2
      // Predicated region
      $region17: #{classifier_forward.1} parent=5 // pred_check
        %p156 = pneg %p155
      $region18: #{classifier_forward.1} parent=5 // pred_check_branch
        %158 = sbr.rel (%p156) target = $region20
      $region19: #{classifier_forward.1} parent=5 // pred_region
        // Predicated region
        $region21: #{classifier_forward.1} parent=19 // pred_check
          %p159 = pneg %p70
        $region22: #{classifier_forward.1} parent=19 // pred_check_branch
          %161 = sbr.rel (%p159) target = $region24
        $region23: #{classifier_forward.1} parent=19 // pred_region
          %s162 = sand.u32 %s60, 1
          %s163 = sand.u32 %s60, 1
          %s164 = smul.addr %s163, 64
          %s165 = scalar_lea.vmem [#allocation2], %s164
          %s166 = smul.u32 4, %s20
          %s167 = smul.addr %s166, 4
          %s168 = scalar_lea.vmem %s1, %s167
          // Predicated region
          $region25: #{classifier_forward.1} parent=23 // pred_check
            _
          $region26: #{classifier_forward.1} parent=23 // pred_check_branch
            %170 = sbr.rel (0) target = $region28
          $region27: #{classifier_forward.1} parent=23 // pred_region
            // Predicated region
            $region29: #{classifier_forward.1} parent=27 // pred_check
              _
            $region30: #{classifier_forward.1} parent=27 // pred_check_branch
              %172 = sbr.rel (0) target = $region32
            $region31: #{classifier_forward.1} parent=27 // pred_region
              loop: start=0, step=1, limit=1
              $region33: #{classifier_forward.1} parent=31 // loop_pre_header
                _
              $region34: #{classifier_forward.1} parent=31 // loop_header
                %s174 = sphi 0, %s178
                %p175 = scmp.ge.s32.totalorder %s174, 1
                %s179 = sphi %s168, %s168
                %s180 = sphi %s165, %s165
              $region35: #{classifier_forward.1} parent=31 // loop_header_branch
                %177 = sbr.rel (%p175) target = $region39
              $region36: #{classifier_forward.1} parent=31 // loop_body
                %v181 = vld [vmem:[%s179] sm:$0xff]
                %182 = vst [vmem:[%s180] sm:$0xff] %v181
                %v183 = vld [vmem:[%s179 + $0x8] sm:$0xff]
                %184 = vst [vmem:[%s180 + $0x8] sm:$0xff] %v183
                %v185 = vld [vmem:[%s179 + $0x20] sm:$0xff]
                %186 = vst [vmem:[%s180 + $0x10] sm:$0xff] %v185
                %v187 = vld [vmem:[%s179 + $0x28] sm:$0xff]
                %188 = vst [vmem:[%s180 + $0x18] sm:$0xff] %v187
                %v189 = vld [vmem:[%s179 + $0x40] sm:$0xff]
                %190 = vst [vmem:[%s180 + $0x20] sm:$0xff] %v189
                %v191 = vld [vmem:[%s179 + $0x48] sm:$0xff]
                %192 = vst [vmem:[%s180 + $0x28] sm:$0xff] %v191
                %v193 = vld [vmem:[%s179 + $0x60] sm:$0xff]
                %194 = vst [vmem:[%s180 + $0x30] sm:$0xff] %v193
                %v195 = vld [vmem:[%s179 + $0x68] sm:$0xff]
                %196 = vst [vmem:[%s180 + $0x38] sm:$0xff] %v195
              $region37: #{classifier_forward.1} parent=31 // loop_footer
                %s178 = sadd.s32 1, %s174
              $region38: #{classifier_forward.1} parent=31 // loop_footer_branch
                %173 = sbr.rel target = $region34
              $region39: #{classifier_forward.1} parent=31 // loop_exit
                _
            $region32: #{classifier_forward.1} parent=27 // pred_fallthru
              _
            // Predicated region
            $region40: #{classifier_forward.1} parent=27 // pred_check
              _
            $region41: #{classifier_forward.1} parent=27 // pred_check_branch
              %198 = sbr.rel target = $region43
            $region42: #{classifier_forward.1} parent=27 // pred_region
              _
            $region43: #{classifier_forward.1} parent=27 // pred_fallthru
              _
          $region28: #{classifier_forward.1} parent=23 // pred_fallthru
            _
          %199 = vnop
        $region24: #{classifier_forward.1} parent=19 // pred_fallthru
          _
        // Predicated region
        $region44: #{classifier_forward.1} parent=19 // pred_check
          %p200 = pneg %p96
        $region45: #{classifier_forward.1} parent=19 // pred_check_branch
          %202 = sbr.rel (%p200) target = $region47
        $region46: #{classifier_forward.1} parent=19 // pred_region
          %s203 = smul.u32 4, %s20
          %p204 = scmp.lt.s32.totalorder %s203, 7
          %s205 = scalar_select %p204, %s203, 7
          %s206 = scalar_lea.vmem %s2, %s205
          %s207 = smul.u32 4, %s20
        $region47: #{classifier_forward.1} parent=19 // pred_fallthru
          _
      $region20: #{classifier_forward.1} parent=5 // pred_fallthru
        _
      %p208 = scmp.le.s32.totalorder 1, %s12
      %p209 = scmp.lt.s32.totalorder %s12, 3
      %p210 = pnand %p208, %p209
      %p211 = pneg %p210
      // Predicated region
      $region48: #{classifier_forward.1} parent=5 // pred_check
        _
      $region49: #{classifier_forward.1} parent=5 // pred_check_branch
        %213 = sbr.rel (%p210) target = $region51
      $region50: #{classifier_forward.1} parent=5 // pred_region
        %s214 = ssub.s32 %s12, 1
        %s215 = sand.u32 %s63, 1
        %s216 = sand.u32 %s63, 1
        %s217 = smul.addr %s216, 64
        %s218 = scalar_lea.vmem [#allocation2], %s217
        // Predicated region
        $region52: #{classifier_forward.1} parent=50 // pred_check
          %p219 = pneg %p76
        $region53: #{classifier_forward.1} parent=50 // pred_check_branch
          %221 = sbr.rel (%p219) target = $region55
        $region54: #{classifier_forward.1} parent=50 // pred_region
          _
        $region55: #{classifier_forward.1} parent=50 // pred_fallthru
          _
        %s222 = smul.u32 4, %s21
        %p223 = scmp.lt.s32.totalorder %s222, 3
        %s224 = scalar_select %p223, %s222, 3
        %s225 = smul.addr %s224, 4
        %s226 = smul.addr %s225, 8
        %s227 = scalar_lea.vmem %s0, %s226
        %p228 = pneg %p50
        %p229 = pneg %p47
        %s230 = sand.u32 %s63, 1
        %s231 = sand.u32 %s63, 1
        %s232 = smul.addr %s231, 64
        %s233 = scalar_lea.vmem [#allocation2], %s232
        %p234 = pneg %p76
        %p235 = pneg %p73
        %s236 = smul.u32 4, %s22
        %p237 = scmp.lt.s32.totalorder %s236, 7
        %s238 = scalar_select %p237, %s236, 7
        %s239 = scalar_lea.vmem %s2, %s238
        %p240 = pneg %p102
        %p241 = pneg %p99
        %p242 = pneg %p130
        %p243 = pneg %p127
        %s244 = sand.u32 %s117, 1
        %s245 = scalar_lea.sflag [#allocation4], %s244
        %s246 = sand.u32 %s117, 1
        %s247 = smul.addr %s246, 16
        %s248 = scalar_lea.vmem [#allocation3], %s247
        %s249 = smul.u32 4, %s21
        %p250 = scmp.lt.s32.totalorder %s249, 3
        %s251 = scalar_select %p250, %s249, 3
        %s252 = smul.addr %s251, 4
        %s253 = smul.addr %s252, 8
        %s254 = scalar_lea.vmem %s0, %s253
        %s255 = smul.u32 4, %s21
        %s256 = smul.u32 4, %s22
        %s257 = smul.u32 4, %s22
        %p258 = scmp.lt.s32.totalorder %s257, 7
        %s259 = scalar_select %p258, %s257, 7
        %s260 = scalar_lea.vmem %s2, %s259
        %s261 = smul.u32 4, %s22
        %s262 = smul.u32 4, %s22
        %v264 = vld [vmem:[%s254] sm:$0xff]
        %v265 = vld [vmem:[%s254 + $0x8] sm:$0xff]
        %v266 = vld [vmem:[%s254 + $0x10] sm:$0xff]
        %v267 = vld [vmem:[%s254 + $0x18] sm:$0xff]
        %v268 = vld [vmem:[%s254 + $0x20] sm:$0xff]
        %v269 = vld [vmem:[%s254 + $0x28] sm:$0xff]
        %v270 = vld [vmem:[%s254 + $0x30] sm:$0xff]
        %v271 = vld [vmem:[%s254 + $0x38] sm:$0xff]
        %v272 = vld [vmem:[%s254 + $0x40] sm:$0xff]
        %v273 = vld [vmem:[%s254 + $0x48] sm:$0xff]
        %v274 = vld [vmem:[%s254 + $0x50] sm:$0xff]
        %v275 = vld [vmem:[%s254 + $0x58] sm:$0xff]
        %v276 = vld [vmem:[%s254 + $0x60] sm:$0xff]
        %v277 = vld [vmem:[%s254 + $0x68] sm:$0xff]
        %v278 = vld [vmem:[%s254 + $0x70] sm:$0xff]
        %v279 = vld [vmem:[%s254 + $0x78] sm:$0xff]
        %vm280 = vcmask 400384
        %v281 = vsel %vm280, %v264, 0.0
        %282 = vadd.xlane.f32.xlu0 %v281
        %v283 = vpop.xlane.xlu0 %282
        %v284 = vsel %vm280, %v265, 0.0
        %285 = vadd.xlane.f32.xlu0 %v284
        %v286 = vpop.xlane.xlu0 %285
        %v287 = vsel %vm280, %v266, 0.0
        %288 = vadd.xlane.f32.xlu0 %v287
        %v289 = vpop.xlane.xlu0 %288
        %v290 = vsel %vm280, %v267, 0.0
        %291 = vadd.xlane.f32.xlu0 %v290
        %v292 = vpop.xlane.xlu0 %291
        %v293 = vsel %vm280, %v268, 0.0
        %294 = vadd.xlane.f32.xlu0 %v293
        %v295 = vpop.xlane.xlu0 %294
        %v296 = vsel %vm280, %v269, 0.0
        %297 = vadd.xlane.f32.xlu0 %v296
        %v298 = vpop.xlane.xlu0 %297
        %v299 = vsel %vm280, %v270, 0.0
        %300 = vadd.xlane.f32.xlu0 %v299
        %v301 = vpop.xlane.xlu0 %300
        %v302 = vsel %vm280, %v271, 0.0
        %303 = vadd.xlane.f32.xlu0 %v302
        %v304 = vpop.xlane.xlu0 %303
        %v305 = vsel %vm280, %v272, 0.0
        %306 = vadd.xlane.f32.xlu0 %v305
        %v307 = vpop.xlane.xlu0 %306
        %v308 = vsel %vm280, %v273, 0.0
        %309 = vadd.xlane.f32.xlu0 %v308
        %v310 = vpop.xlane.xlu0 %309
        %v311 = vsel %vm280, %v274, 0.0
        %312 = vadd.xlane.f32.xlu0 %v311
        %v313 = vpop.xlane.xlu0 %312
        %v314 = vsel %vm280, %v275, 0.0
        %315 = vadd.xlane.f32.xlu0 %v314
        %v316 = vpop.xlane.xlu0 %315
        %v317 = vsel %vm280, %v276, 0.0
        %318 = vadd.xlane.f32.xlu0 %v317
        %v319 = vpop.xlane.xlu0 %318
        %v320 = vsel %vm280, %v277, 0.0
        %321 = vadd.xlane.f32.xlu0 %v320
        %v322 = vpop.xlane.xlu0 %321
        %v323 = vsel %vm280, %v278, 0.0
        %324 = vadd.xlane.f32.xlu0 %v323
        %v325 = vpop.xlane.xlu0 %324
        %v326 = vsel %vm280, %v279, 0.0
        %327 = vadd.xlane.f32.xlu0 %v326
        %v328 = vpop.xlane.xlu0 %327
        %v329 = vrcp.pop 49.0
        %v330 = vmul.f32 %v283, %v329
        %v331 = vmul.f32 %v286, %v329
        %v332 = vmul.f32 %v289, %v329
        %v333 = vmul.f32 %v292, %v329
        %v334 = vmul.f32 %v295, %v329
        %v335 = vmul.f32 %v298, %v329
        %v336 = vmul.f32 %v301, %v329
        %v337 = vmul.f32 %v304, %v329
        %v338 = vmul.f32 %v307, %v329
        %v339 = vmul.f32 %v310, %v329
        %v340 = vmul.f32 %v313, %v329
        %v341 = vmul.f32 %v316, %v329
        %v342 = vmul.f32 %v319, %v329
        %v343 = vmul.f32 %v322, %v329
        %v344 = vmul.f32 %v325, %v329
        %v345 = vmul.f32 %v328, %v329
        %v346 = vpack.c.bf16 %v331, %v330
        %v347 = vpack.c.bf16 %v333, %v332
        %v348 = vpack.c.bf16 %v335, %v334
        %v349 = vpack.c.bf16 %v337, %v336
        %v350 = vpack.c.bf16 %v339, %v338
        %v351 = vpack.c.bf16 %v341, %v340
        %v352 = vpack.c.bf16 %v343, %v342
        %v353 = vpack.c.bf16 %v345, %v344
        %v354 = vld [vmem:[%s218] sm:$0xff]
        %v355 = vld [vmem:[%s218 + $0x8] sm:$0xff]
        %v356 = vld [vmem:[%s218 + $0x10] sm:$0xff]
        %v357 = vld [vmem:[%s218 + $0x18] sm:$0xff]
        %v358 = vld [vmem:[%s218 + $0x20] sm:$0xff]
        %v359 = vld [vmem:[%s218 + $0x28] sm:$0xff]
        %v360 = vld [vmem:[%s218 + $0x30] sm:$0xff]
        %v361 = vld [vmem:[%s218 + $0x38] sm:$0xff]
        %v362 = vld [vmem:[%s260] sm:$0xf]
        %v364 = vlaneseq
        %v365 = vshrl.u32 %v364, 7
        %v366 = vsub.s32 0, %v365
        %v367 = vrot.slane %v362, %v366
        %v368 = vlaneseq
        %v369 = vshrl.u32 %v368, 7
        %v370 = vsub.s32 1, %v369
        %v371 = vrot.slane %v362, %v370
        %v372 = vlaneseq
        %v373 = vshrl.u32 %v372, 7
        %v374 = vsub.s32 2, %v373
        %v375 = vrot.slane %v362, %v374
        %v376 = vlaneseq
        %v377 = vshrl.u32 %v376, 7
        %v378 = vsub.s32 3, %v377
        %v379 = vrot.slane %v362, %v378
        %v392 = vunpack.c.l.b16 %v346
        %v393 = vunpack.c.h.b16 %v346
        %v394 = vunpack.c.l.b16 %v347
        %v395 = vunpack.c.h.b16 %v347
        %v396 = vunpack.c.l.b16 %v348
        %v397 = vunpack.c.h.b16 %v348
        %v398 = vunpack.c.l.b16 %v349
        %v399 = vunpack.c.h.b16 %v349
        %v400 = vunpack.c.l.b16 %v350
        %v401 = vunpack.c.h.b16 %v350
        %v402 = vunpack.c.l.b16 %v351
        %v403 = vunpack.c.h.b16 %v351
        %v404 = vunpack.c.l.b16 %v352
        %v405 = vunpack.c.h.b16 %v352
        %v406 = vunpack.c.l.b16 %v353
        %v407 = vunpack.c.h.b16 %v353
        %v408 = vlaneseq
        %v409 = vand.u32 %v408, 127
        %v410 = vlaneseq
        %v411 = vshrl.u32 %v410, 7
        %v412 = vsub.s32 %v409, %v411
        %v413 = vrot.slane %v392, %v412
        %v414 = vadd.s32 %v409, 4294967288
        %v415 = vlaneseq
        %v416 = vshrl.u32 %v415, 7
        %v417 = vsub.s32 %v414, %v416
        %v418 = vrot.slane %v393, %v417
        %vm419 = vcmask 130112
        %v420 = vsel %vm419, %v418, %v413
        %v421 = vadd.s32 %v409, 4294967280
        %v422 = vlaneseq
        %v423 = vshrl.u32 %v422, 7
        %v424 = vsub.s32 %v421, %v423
        %v425 = vrot.slane %v394, %v424
        %vm426 = vcmask 195712
        %v427 = vsel %vm426, %v425, %v420
        %v428 = vadd.s32 %v409, 4294967272
        %v429 = vlaneseq
        %v430 = vshrl.u32 %v429, 7
        %v431 = vsub.s32 %v428, %v430
        %v432 = vrot.slane %v395, %v431
        %vm433 = vcmask 261312
        %v434 = vsel %vm433, %v432, %v427
        %v435 = vlaneseq
        %v436 = vshrl.u32 %v435, 7
        %v437 = vsub.s32 %v409, %v436
        %v438 = vrot.slane %v396, %v437
        %v439 = vlaneseq
        %v440 = vshrl.u32 %v439, 7
        %v441 = vsub.s32 %v414, %v440
        %v442 = vrot.slane %v397, %v441
        %v443 = vsel %vm419, %v442, %v438
        %v444 = vlaneseq
        %v445 = vshrl.u32 %v444, 7
        %v446 = vsub.s32 %v421, %v445
        %v447 = vrot.slane %v398, %v446
        %v448 = vsel %vm426, %v447, %v443
        %v449 = vlaneseq
        %v450 = vshrl.u32 %v449, 7
        %v451 = vsub.s32 %v428, %v450
        %v452 = vrot.slane %v399, %v451
        %v453 = vsel %vm433, %v452, %v448
        %v454 = vlaneseq
        %v455 = vshrl.u32 %v454, 7
        %v456 = vsub.s32 %v409, %v455
        %v457 = vrot.slane %v400, %v456
        %v458 = vlaneseq
        %v459 = vshrl.u32 %v458, 7
        %v460 = vsub.s32 %v414, %v459
        %v461 = vrot.slane %v401, %v460
        %v462 = vsel %vm419, %v461, %v457
        %v463 = vlaneseq
        %v464 = vshrl.u32 %v463, 7
        %v465 = vsub.s32 %v421, %v464
        %v466 = vrot.slane %v402, %v465
        %v467 = vsel %vm426, %v466, %v462
        %v468 = vlaneseq
        %v469 = vshrl.u32 %v468, 7
        %v470 = vsub.s32 %v428, %v469
        %v471 = vrot.slane %v403, %v470
        %v472 = vsel %vm433, %v471, %v467
        %v473 = vlaneseq
        %v474 = vshrl.u32 %v473, 7
        %v475 = vsub.s32 %v409, %v474
        %v476 = vrot.slane %v404, %v475
        %v477 = vlaneseq
        %v478 = vshrl.u32 %v477, 7
        %v479 = vsub.s32 %v414, %v478
        %v480 = vrot.slane %v405, %v479
        %v481 = vsel %vm419, %v480, %v476
        %v482 = vlaneseq
        %v483 = vshrl.u32 %v482, 7
        %v484 = vsub.s32 %v421, %v483
        %v485 = vrot.slane %v406, %v484
        %v486 = vsel %vm426, %v485, %v481
        %v487 = vlaneseq
        %v488 = vshrl.u32 %v487, 7
        %v489 = vsub.s32 %v428, %v488
        %v490 = vrot.slane %v407, %v489
        %v491 = vsel %vm433, %v490, %v486
        %vm492 = vcmask 1041409
        %v493 = vsel %vm492, %v453, %v434
        %vm494 = vcmask 1042434
        %v495 = vsel %vm494, %v472, %v493
        %vm496 = vcmask 1043459
        %v497 = vsel %vm496, %v491, %v495
        %v498 = vpack.c.b16 %v497, %v497
        %v507 = vunpack.c.l.b16 %v354
        %v508 = vunpack.c.h.b16 %v354
        %v509 = vunpack.c.l.b16 %v355
        %v510 = vunpack.c.h.b16 %v355
        %v511 = vunpack.c.l.b16 %v356
        %v512 = vunpack.c.h.b16 %v356
        %v513 = vunpack.c.l.b16 %v357
        %v514 = vunpack.c.h.b16 %v357
        %v515 = vunpack.c.l.b16 %v358
        %v516 = vunpack.c.h.b16 %v358
        %v517 = vunpack.c.l.b16 %v359
        %v518 = vunpack.c.h.b16 %v359
        %v519 = vunpack.c.l.b16 %v360
        %v520 = vunpack.c.h.b16 %v360
        %v521 = vunpack.c.l.b16 %v361
        %v522 = vunpack.c.h.b16 %v361
        %v523 = vpack.c.b16 %v511, %v507
        %v524 = vpack.c.b16 %v512, %v508
        %v525 = vpack.c.b16 %v513, %v509
        %v526 = vpack.c.b16 %v514, %v510
        %v527 = vpack.c.b16 %v519, %v515
        %v528 = vpack.c.b16 %v520, %v516
        %v529 = vpack.c.b16 %v521, %v517
        %v530 = vpack.c.b16 %v522, %v518
        %vm539 = vcmask 261120
        %v541 = vsel %vm539, %v498, 0
        %543 = vmatprep.subr.bf16.mxu0 %v524
        %544 = vmatpush1.bf16.msra.mxu0 %v523
        %545 = vmatprep.subr.bf16.mxu0 %v528
        %546 = vmatpush1.bf16.msra.mxu0 %v527
        %547 = vmatprep.subr.bf16.mxu0 0
        %548 = vmatpush1.bf16.msra.mxu0 0
        %549 = vmatprep.subr.bf16.mxu0 0
        %550 = vmatpush1.bf16.msra.mxu0 0
        %551 = vmatprep.subr.bf16.mxu0 0
        %552 = vmatpush1.bf16.msra.mxu0 0
        %553 = vmatprep.subr.bf16.mxu0 0
        %554 = vmatpush1.bf16.msra.mxu0 0
        %555 = vmatprep.subr.bf16.mxu0 0
        %556 = vmatpush1.bf16.msra.mxu0 0
        %557 = vmatprep.subr.bf16.mxu0 0
        %558 = vmatpush1.bf16.msra.mxu0 0
        %559 = vmatprep.subr.bf16.mxu0 0
        %560 = vmatpush1.bf16.msra.mxu0 0
        %561 = vmatprep.subr.bf16.mxu0 0
        %562 = vmatpush1.bf16.msra.mxu0 0
        %563 = vmatprep.subr.bf16.mxu0 0
        %564 = vmatpush1.bf16.msra.mxu0 0
        %565 = vmatprep.subr.bf16.mxu0 0
        %566 = vmatpush1.bf16.msra.mxu0 0
        %567 = vmatprep.subr.bf16.mxu0 0
        %568 = vmatpush1.bf16.msra.mxu0 0
        %569 = vmatprep.subr.bf16.mxu0 0
        %570 = vmatpush1.bf16.msra.mxu0 0
        %571 = vmatprep.subr.bf16.mxu0 0
        %572 = vmatpush1.bf16.msra.mxu0 0
        %573 = vmatprep.subr.bf16.mxu0 0
        %574 = vmatpush1.bf16.msra.mxu0 0
        %575 = vmatprep.mubr.bf16.mxu0 0
        %576 = vmatmul.mubr.bf16.gmra.mrb[0].mxu0 %v541
        %v577 = vpop.f32.mrb[0].mxu0
        %v578 = vadd.f32 %v367, %v577
        %v579 = vpop.f32.mrb[0].mxu0
        %v580 = vadd.f32 %v371, %v579
        %v581 = vpop.f32.mrb[0].mxu0
        %v582 = vpop.f32.mrb[0].mxu0
        %583 = vdwg.mxu0
        %584 = vmatprep.subr.bf16.mxu0 %v526
        %585 = vmatpush1.bf16.msra.mxu0 %v525
        %586 = vmatprep.subr.bf16.mxu0 %v530
        %587 = vmatpush1.bf16.msra.mxu0 %v529
        %588 = vmatprep.subr.bf16.mxu0 0
        %589 = vmatpush1.bf16.msra.mxu0 0
        %590 = vmatprep.subr.bf16.mxu0 0
        %591 = vmatpush1.bf16.msra.mxu0 0
        %592 = vmatprep.subr.bf16.mxu0 0
        %593 = vmatpush1.bf16.msra.mxu0 0
        %594 = vmatprep.subr.bf16.mxu0 0
        %595 = vmatpush1.bf16.msra.mxu0 0
        %596 = vmatprep.subr.bf16.mxu0 0
        %597 = vmatpush1.bf16.msra.mxu0 0
        %598 = vmatprep.subr.bf16.mxu0 0
        %599 = vmatpush1.bf16.msra.mxu0 0
        %600 = vmatprep.subr.bf16.mxu0 0
        %601 = vmatpush1.bf16.msra.mxu0 0
        %602 = vmatprep.subr.bf16.mxu0 0
        %603 = vmatpush1.bf16.msra.mxu0 0
        %604 = vmatprep.subr.bf16.mxu0 0
        %605 = vmatpush1.bf16.msra.mxu0 0
        %606 = vmatprep.subr.bf16.mxu0 0
        %607 = vmatpush1.bf16.msra.mxu0 0
        %608 = vmatprep.subr.bf16.mxu0 0
        %609 = vmatpush1.bf16.msra.mxu0 0
        %610 = vmatprep.subr.bf16.mxu0 0
        %611 = vmatpush1.bf16.msra.mxu0 0
        %612 = vmatprep.subr.bf16.mxu0 0
        %613 = vmatpush1.bf16.msra.mxu0 0
        %614 = vmatprep.subr.bf16.mxu0 0
        %615 = vmatpush1.bf16.msra.mxu0 0
        %616 = vmatprep.mubr.bf16.mxu0 0
        %617 = vmatmul.mubr.bf16.gmra.mrb[0].mxu0 %v541
        %v618 = vpop.f32.mrb[0].mxu0
        %v619 = vadd.f32 %v375, %v618
        %v620 = vpop.f32.mrb[0].mxu0
        %v621 = vadd.f32 %v379, %v620
        %v622 = vpop.f32.mrb[0].mxu0
        %v623 = vpop.f32.mrb[0].mxu0
        %624 = vdwg.mxu0
        %v629 = vcombine.low %v578, %v580
        %v630 = vcombine.low %v619, %v621
        %633 = vst [vmem:[%s248] sm:$0xff] %v629
        %634 = vst [vmem:[%s248 + $0x8] sm:$0xff] %v630
        %s635 = sand.u32 %s117, 1
        %s636 = scalar_lea.sflag [#allocation4], %s635
        %s637 = sand.u32 %s117, 1
        %s638 = smul.addr %s637, 16
        %s639 = scalar_lea.vmem [#allocation3], %s638
        // Predicated region
        $region56: #{classifier_forward.1} parent=50 // pred_check
          %p640 = pneg %p127
        $region57: #{classifier_forward.1} parent=50 // pred_check_branch
          %642 = sbr.rel (%p640) target = $region59
        $region58: #{classifier_forward.1} parent=50 // pred_region
          %s643 = smul.u32 4, %s22
          %s645 = ssub.s32 256, 256
          %646 = vsyncadd %s636, %s645
          %s647 = smul.addr %s21, 8
          %s648 = sadd.s32 %s643, %s647
          %s649 = smul.addr %s648, 64
          %s650 = scalar_lea.hbm %s3, %s649
          %s652 = sshll.u32 %s639, 4
          %s653 = int_to_ptr.vmem [resolvable:$true] %s652
          %655 = dma.vmem_to_hbm [thread:$0]  %s653, 256, %s650, %s636
        $region59: #{classifier_forward.1} parent=50 // pred_fallthru
          _
      $region51: #{classifier_forward.1} parent=5 // pred_fallthru
        _
      %p656 = scmp.le.s32.totalorder 2, %s12
      // Predicated region
      $region60: #{classifier_forward.1} parent=5 // pred_check
        %p657 = pneg %p656
      $region61: #{classifier_forward.1} parent=5 // pred_check_branch
        %659 = sbr.rel (%p657) target = $region63
      $region62: #{classifier_forward.1} parent=5 // pred_region
        %s660 = ssub.s32 %s12, 2
        // Predicated region
        $region64: #{classifier_forward.1} parent=62 // pred_check
          %p661 = pneg %p133
        $region65: #{classifier_forward.1} parent=62 // pred_check_branch
          %663 = sbr.rel (%p661) target = $region67
        $region66: #{classifier_forward.1} parent=62 // pred_region
          %s664 = sand.u32 %s118, 1
          %s665 = scalar_lea.sflag [#allocation4], %s664
          %s666 = sand.u32 %s118, 1
          %s667 = smul.addr %s666, 16
          %s668 = scalar_lea.vmem [#allocation3], %s667
          %669 = dma.done %s665, 256
        $region67: #{classifier_forward.1} parent=62 // pred_fallthru
          _
      $region63: #{classifier_forward.1} parent=5 // pred_fallthru
        _
    $region6: #{classifier_forward.1} parent=1 // loop_footer
      %s16 = sadd.s32 1, %s12
    $region7: #{classifier_forward.1} parent=1 // loop_footer_branch
      %11 = sbr.rel target = $region3
    $region8: #{classifier_forward.1} parent=1 // loop_exit
      _
    %670 = vsyncpa [#allocation4], 1
    %s671 = scalar_lea.sflag [#allocation4], 1
    %672 = vsyncpa %s671, 1

</llo_original>
